<compile_context>
chip_gen: v7x
topology: tpu7x:2x2x1
jax: 0.10.0
libtpu: 0.0.40
codegen_flags: <defaults>
</compile_context>

<pallas_src>
import functools

import jax
import jax.numpy as jnp
from jax.experimental import pallas as pl
from jax.experimental.pallas import tpu as pltpu


def _round_up(x, m):
    return (x + m - 1) // m * m


def tagconv_kernel(a_ref, x_ref, w0_ref, wk_ref, b_ref, o_ref,
                   xbuf_ref, acc_ref, *, K, TM, N_pad, activation):
    """One grid step = (hop kk+1, row tile t).

    a_ref  : [TM, N_pad]          bf16  normalized-adjacency rows of this tile
    x_ref  : [N_pad, F_in]        bf16  raw node features (resident)
    w0_ref : [F_in, F_out_pad]    bf16  W_0 (resident)
    wk_ref : [1, F_in, F_out_pad] bf16  W_{kk+1} (streamed along the hop axis)
    b_ref  : [1, F_out_pad]       f32   bias (resident)
    o_ref  : [TM, F_out_pad]      f32   output tile (lane-dense)
    xbuf_ref : [2*N_pad, F_in]    f32   ping-pong buffer holding x_{k-1} / x_k
    acc_ref  : [N_pad, F_out_pad] f32   running output accumulator (all tiles)
    """
    kk = pl.program_id(0)                       # hop index: computes x_{kk+1}
    t = pl.program_id(1)                        # row-tile index
    row0 = pl.multiple_of(t * TM, 8)

    # Very first grid step: stage x_0 into ping-pong slot 1 so every hop reads
    # x_{k-1} from the scratch uniformly (x_0 in slot 1, x_1 -> slot 0, ...).
    @pl.when((kk == 0) & (t == 0))
    def _():
        xbuf_ref[pl.ds(N_pad, N_pad), :] = x_ref[...].astype(jnp.float32)

    src_off = pl.multiple_of(((kk + 1) % 2) * N_pad, 8)          # x_kk (full)
    dst_off = pl.multiple_of((kk % 2) * N_pad + row0, 8)         # x_{kk+1}[tile]

    # Propagation: x_{k+1}[tile rows] = A[tile rows, :] @ x_k  (bf16 MXU, f32 acc)
    x_prev = xbuf_ref[pl.ds(src_off, N_pad), :]                  # [N_pad, F_in] f32
    x_next = jnp.dot(a_ref[...], x_prev.astype(jnp.bfloat16),
                     preferred_element_type=jnp.float32)         # [TM, F_in] f32
    xbuf_ref[pl.ds(dst_off, TM), :] = x_next

    # Projection contribution of this hop: x_{k+1} @ W_{k+1}.
    contrib = jnp.dot(x_next.astype(jnp.bfloat16), wk_ref[0],
                      preferred_element_type=jnp.float32)        # [TM, F_out_pad]

    @pl.when(kk == 0)
    def _():
        # Accumulator init folds the k=0 term (x_0 @ W_0) in; no separate pass
        # over A is spent on hop 0.
        x0_tile = x_ref[pl.ds(row0, TM), :]
        acc_ref[pl.ds(row0, TM), :] = contrib + jnp.dot(
            x0_tile, w0_ref[...], preferred_element_type=jnp.float32)

    @pl.when(kk > 0)
    def _():
        acc_ref[pl.ds(row0, TM), :] += contrib

    acc_tile = acc_ref[pl.ds(row0, TM), :]

    @pl.when(kk < K - 1)
    def _():
        # Intermediate visits: store the running partial (overwritten by the
        # final visit; keeps the output buffer deterministic).
        o_ref[...] = acc_tile.astype(o_ref.dtype)

    @pl.when(kk == K - 1)
    def _():
        res = acc_tile + b_ref[...]
        if activation == 'relu':
            res = jnp.maximum(res, 0.0)
        o_ref[...] = res.astype(o_ref.dtype)


def tagconv_forward(a_norm, x, weights, bias, *, K, activation='relu',
                    tile_rows=None, vmem_budget_bytes=36 * 1024 * 1024):
    """TAGConv forward.

    a_norm: [N, N] f32 dense normalized adjacency, x: [N, F_in],
    weights: [K+1, F_in, F_out], bias: [F_out].  Returns [N, F_out] f32.
    """
    assert K >= 1, "tiled kernel assumes at least one propagation hop"
    N, F_in = x.shape
    F_out = weights.shape[-1]
    F_out_pad = _round_up(F_out, 128)            # lane-dense output stores

    def vmem_est(tm, n_pad):
        return (2 * tm * n_pad * 2                       # double-buffered A rows (bf16)
                + 2 * n_pad * F_in * 2                   # resident x (bf16)
                + 2 * (K + 1) * F_in * F_out_pad * 2     # resident / streamed W (bf16)
                + 2 * tm * F_out_pad * 4                 # double-buffered out tile
                + 2 * n_pad * F_in * 4                   # x_k ping-pong scratch (f32)
                + n_pad * F_out_pad * 4)                 # output accumulator (f32)

    if tile_rows is not None:
        TM = max(16, (tile_rows // 16) * 16)
    else:
        TM = min(256, _round_up(N, 16))
        while TM > 16 and vmem_est(TM, _round_up(N, TM)) > vmem_budget_bytes:
            TM = max(16, _round_up(TM // 2, 16))         # re-budget for v7x 64 MiB VMEM
    N_pad = _round_up(N, TM)
    T = N_pad // TM

    # Pad and cast the MXU operands to bf16 (A dominates HBM traffic); bias f32.
    a_p = jnp.zeros((N_pad, N_pad), jnp.float32).at[:N, :N].set(a_norm)
    a_p = a_p.astype(jnp.bfloat16)
    x_p = jnp.zeros((N_pad, F_in), jnp.float32).at[:N, :].set(x)
    x_p = x_p.astype(jnp.bfloat16)
    w_p = jnp.zeros((K + 1, F_in, F_out_pad), jnp.float32)
    w_p = w_p.at[:, :, :F_out].set(weights).astype(jnp.bfloat16)
    w0_p = w_p[0]                 # [F_in, F_out_pad]
    wk_p = w_p[1:]                # [K, F_in, F_out_pad], streamed per hop
    b_p = jnp.zeros((1, F_out_pad), jnp.float32).at[0, :F_out].set(bias)

    kernel = functools.partial(tagconv_kernel, K=K, TM=TM, N_pad=N_pad,
                               activation=activation)

    flops = 2 * K * N_pad * N_pad * F_in + 2 * (K + 1) * N_pad * F_in * F_out_pad
    bytes_accessed = (K * N_pad * N_pad * 2            # A rows, re-read once per hop
                      + N_pad * F_in * 2
                      + (K + 1) * F_in * F_out_pad * 2
                      + K * N_pad * F_out_pad * 4)     # output writebacks

    out = pl.pallas_call(
        kernel,
        out_shape=jax.ShapeDtypeStruct((N_pad, F_out_pad), jnp.float32),
        grid_spec=pltpu.PrefetchScalarGridSpec(
            num_scalar_prefetch=0,
            grid=(K, T),                               # hops outer, row tiles inner
            in_specs=[
                pl.BlockSpec((TM, N_pad), lambda k, t: (t, 0)),            # A (streamed)
                pl.BlockSpec((N_pad, F_in), lambda k, t: (0, 0)),          # x (resident)
                pl.BlockSpec((F_in, F_out_pad), lambda k, t: (0, 0)),      # W_0
                pl.BlockSpec((1, F_in, F_out_pad), lambda k, t: (k, 0, 0)),  # W_{k+1}
                pl.BlockSpec((1, F_out_pad), lambda k, t: (0, 0)),         # bias
            ],
            out_specs=pl.BlockSpec((TM, F_out_pad), lambda k, t: (t, 0)),
            scratch_shapes=[
                pltpu.VMEM((2 * N_pad, F_in), jnp.float32),    # x_k ping-pong
                pltpu.VMEM((N_pad, F_out_pad), jnp.float32),   # output accumulator
            ],
        ),
        # Both axes "arbitrary": tiles of one hop exchange the full x_k through
        # per-core VMEM scratch, so the tile axis cannot be megacore-sharded.
        compiler_params=pltpu.CompilerParams(
            dimension_semantics=("arbitrary", "arbitrary"),
            vmem_limit_bytes=48 * 1024 * 1024),
        cost_estimate=pl.CostEstimate(flops=flops, transcendentals=0,
                                      bytes_accessed=bytes_accessed),
    )(a_p, x_p, w0_p, wk_p, b_p)
    return out[:N, :F_out]


def gcn_norm_dense(edge_index, edge_weight, num_nodes):
    """PyG gcn_norm (improved=False, add_self_loops=False, as TAGConv uses) -> dense [N, N].
    Sparse scatter-add glue in plain JAX (no clean Pallas tile for it)."""
    row = edge_index[0]   # source j
    col = edge_index[1]   # target i
    deg = jnp.zeros((num_nodes,), jnp.float32).at[col].add(edge_weight)
    deg_inv_sqrt = jnp.where(deg > 0, jax.lax.rsqrt(deg), 0.0)
    norm = deg_inv_sqrt[row] * edge_weight * deg_inv_sqrt[col]
    a = jnp.zeros((num_nodes, num_nodes), jnp.float32).at[col, row].add(norm)
    return a


def tagconv_ref_f32(a, x, w, b, K, activation):
    out = x @ w[0]
    x_k = x
    for k in range(1, K + 1):
        x_k = a @ x_k
        out = out + x_k @ w[k]
    out = out + b[None, :]
    if activation == 'relu':
        out = jnp.maximum(out, 0.0)
    return out


def tagconv_ref_bf16(a, x, w, b, K, activation):
    """Mirrors the kernel's precision: bf16 MXU operands, f32 accumulation."""
    a_bf = a.astype(jnp.bfloat16)
    x_bf = x.astype(jnp.bfloat16)
    w_bf = w.astype(jnp.bfloat16)
    out = jnp.dot(x_bf, w_bf[0], preferred_element_type=jnp.float32)
    x_k = x_bf.astype(jnp.float32)
    for k in range(1, K + 1):
        x_k = jnp.dot(a_bf, x_k.astype(jnp.bfloat16),
                      preferred_element_type=jnp.float32)
        out = out + jnp.dot(x_k.astype(jnp.bfloat16), w_bf[k],
                            preferred_element_type=jnp.float32)
    out = out + b[None, :]
    if activation == 'relu':
        out = jnp.maximum(out, 0.0)
    return out


if __name__ == "__main__":
    # Small deterministic problem: N=90 nodes (padded to 96), F_in=8, F_out=16,
    # K=3 hops, relu, batch_norm=False.  tile_rows=32 -> grid (K=3, tiles=3),
    # exercising the multi-tile streaming / ping-pong / accumulator paths.
    N, F_IN, F_OUT, K = 90, 8, 16, 3
    key = jax.random.PRNGKey(0)
    k_x, k_w, k_b, k_ew = jax.random.split(key, 4)

    # Undirected ring graph: edges i->i+1 and i+1->i (E = 2N), random weights.
    src = jnp.arange(N, dtype=jnp.int32)
    dst = (src + 1) % N
    edge_index = jnp.stack([jnp.concatenate([src, dst]),
                            jnp.concatenate([dst, src])], axis=0)   # [2, 2N]
    edge_weight = jax.random.uniform(k_ew, (2 * N,), jnp.float32,
                                     minval=0.5, maxval=1.5)

    # Node features and deterministic synthetic parameters.
    x = jax.random.normal(k_x, (N, F_IN), jnp.float32)
    weights = 0.1 * jax.random.normal(k_w, (K + 1, F_IN, F_OUT), jnp.float32)
    bias = 0.1 * jax.random.normal(k_b, (F_OUT,), jnp.float32)

    # Glue: dense normalized adjacency from the sparse edge list.
    a_norm = gcn_norm_dense(edge_index, edge_weight, N)

    out = tagconv_forward(a_norm, x, weights, bias, K=K, activation='relu',
                          tile_rows=32)
    out = jax.block_until_ready(out)
    assert out.shape == (N, F_OUT)

    # Check against a reference with the kernel's own precision (bf16 operands,
    # f32 accumulation) ...
    ref_bf16 = tagconv_ref_bf16(a_norm, x, weights, bias, K, 'relu')
    assert jnp.allclose(out, ref_bf16, atol=2e-3, rtol=2e-3), \
        "mismatch vs bf16-precision reference"

    # ... and a looser sanity check against pure-f32 math (bf16-level deviation).
    ref_f32 = tagconv_ref_f32(a_norm, x, weights, bias, K, 'relu')
    assert jnp.allclose(out, ref_f32, atol=5e-2, rtol=5e-2), \
        "mismatch vs f32 reference"

    print("KERNEL_OK")
</pallas_src>

<mosaic_0001>
module attributes {stable_mosaic.version = 11 : i64} {
  func.func @tagconv_kernel(%arg0: i32, %arg1: i32, %arg2: memref<32x96xbf16, #tpu.memory_space<vmem>>, %arg3: memref<96x8xbf16, #tpu.memory_space<vmem>>, %arg4: memref<8x128xbf16, #tpu.memory_space<vmem>>, %arg5: memref<1x8x128xbf16, #tpu.memory_space<vmem>>, %arg6: memref<1x128xf32, #tpu.memory_space<vmem>>, %arg7: memref<32x128xf32, #tpu.memory_space<vmem>>, %arg8: memref<192x8xf32, #tpu.memory_space<vmem>>, %arg9: memref<96x128xf32, #tpu.memory_space<vmem>>) attributes {dimension_semantics = [#tpu.dimension_semantics<arbitrary>, #tpu.dimension_semantics<arbitrary>], iteration_bounds = array<i64: 3, 3>, scalar_prefetch = 0 : i64, scratch_operands = 2 : i64, tpu.core_type = #tpu.core_type<tc>, window_params = [{transform_indices = @transform_0, window_bounds = array<i64: 32, 96>}, {pipeline_mode = #tpu.pipeline_mode<synchronous>, transform_indices = @transform_1, window_bounds = array<i64: 96, 8>}, {pipeline_mode = #tpu.pipeline_mode<synchronous>, transform_indices = @transform_2, window_bounds = array<i64: 8, 128>}, {transform_indices = @transform_3, window_bounds = array<i64: 1, 8, 128>}, {pipeline_mode = #tpu.pipeline_mode<synchronous>, transform_indices = @transform_4, window_bounds = array<i64: 1, 128>}, {transform_indices = @transform_5, window_bounds = array<i64: 32, 128>}]} {
    %c32_i32 = arith.constant 32 : i32
    %0 = arith.muli %arg1, %c32_i32 : i32
    %1 = tpu.assume_multiple %0, 8 : i32
    %c0_i32 = arith.constant 0 : i32
    %2 = arith.cmpi eq, %arg0, %c0_i32 : i32
    %c0_i32_0 = arith.constant 0 : i32
    %3 = arith.cmpi eq, %arg1, %c0_i32_0 : i32
    %4 = arith.andi %2, %3 : i1
    %5 = arith.extui %4 : i1 to i32
    %c0_i32_1 = arith.constant 0 : i32
    %6 = arith.cmpi ne, %5, %c0_i32_1 : i32
    scf.if %6 {
      %c0_30 = arith.constant 0 : index
      %c0_31 = arith.constant 0 : index
      %58 = vector.load %arg3[%c0_30, %c0_31] : memref<96x8xbf16, #tpu.memory_space<vmem>>, vector<96x8xbf16>
      %59 = arith.extf %58 : vector<96x8xbf16> to vector<96x8xf32>
      %c96 = arith.constant 96 : index
      %c0_32 = arith.constant 0 : index
      %60 = vector.load %arg8[%c96, %c0_32] : memref<192x8xf32, #tpu.memory_space<vmem>>, vector<96x8xf32>
      tpu.vector_store %arg8[%c96, %c0_32], %59 {strides = array<i32>} : memref<192x8xf32, #tpu.memory_space<vmem>>, vector<96x8xf32>,
    } else {
    }
    %c1_i32 = arith.constant 1 : i32
    %7 = arith.addi %arg0, %c1_i32 : i32
    %c2_i32 = arith.constant 2 : i32
    %c0_i32_2 = arith.constant 0 : i32
    %8 = arith.cmpi eq, %c2_i32, %c0_i32_2 : i32
    %c1_i32_3 = arith.constant 1 : i32
    %9 = arith.select %8, %c1_i32_3, %c2_i32 : i32
    %10 = arith.remsi %7, %9 : i32
    %c0_i32_4 = arith.constant 0 : i32
    %11 = arith.cmpi ne, %10, %c0_i32_4 : i32
    %c0_i32_5 = arith.constant 0 : i32
    %12 = arith.cmpi slt, %10, %c0_i32_5 : i32
    %c0_i32_6 = arith.constant 0 : i32
    %13 = arith.cmpi slt, %9, %c0_i32_6 : i32
    %14 = arith.xori %12, %13 : i1
    %15 = arith.andi %14, %11 : i1
    %16 = arith.addi %10, %9 : i32
    %17 = arith.select %15, %16, %10 : i32
    %c96_i32 = arith.constant 96 : i32
    %18 = arith.muli %17, %c96_i32 : i32
    %19 = tpu.assume_multiple %18, 8 : i32
    %c2_i32_7 = arith.constant 2 : i32
    %c0_i32_8 = arith.constant 0 : i32
    %20 = arith.cmpi eq, %c2_i32_7, %c0_i32_8 : i32
    %c1_i32_9 = arith.constant 1 : i32
    %21 = arith.select %20, %c1_i32_9, %c2_i32_7 : i32
    %22 = arith.remsi %arg0, %21 : i32
    %c0_i32_10 = arith.constant 0 : i32
    %23 = arith.cmpi ne, %22, %c0_i32_10 : i32
    %c0_i32_11 = arith.constant 0 : i32
    %24 = arith.cmpi slt, %22, %c0_i32_11 : i32
    %c0_i32_12 = arith.constant 0 : i32
    %25 = arith.cmpi slt, %21, %c0_i32_12 : i32
    %26 = arith.xori %24, %25 : i1
    %27 = arith.andi %26, %23 : i1
    %28 = arith.addi %22, %21 : i32
    %29 = arith.select %27, %28, %22 : i32
    %c96_i32_13 = arith.constant 96 : i32
    %30 = arith.muli %29, %c96_i32_13 : i32
    %31 = arith.addi %30, %1 : i32
    %32 = tpu.assume_multiple %31, 8 : i32
    %33 = arith.index_cast %19 : i32 to index
    %c0 = arith.constant 0 : index
    %34 = vector.load %arg8[%33, %c0] : memref<192x8xf32, #tpu.memory_space<vmem>>, vector<96x8xf32>
    %c0_14 = arith.constant 0 : index
    %c0_15 = arith.constant 0 : index
    %35 = vector.load %arg2[%c0_14, %c0_15] : memref<32x96xbf16, #tpu.memory_space<vmem>>, vector<32x96xbf16>
    %36 = arith.truncf %34 : vector<96x8xf32> to vector<96x8xbf16>
    %cst = arith.constant dense<0.000000e+00> : vector<32x8xf32>
    %37 = tpu.matmul %35, %36, %cst {dimension_numbers = #tpu.dot_dimension_numbers<[1], [0], [0], [1], [0, 0, 1, 1], [], []>} : vector<32x96xbf16>, vector<96x8xbf16>, vector<32x8xf32> -> vector<32x8xf32>
    %38 = arith.index_cast %32 : i32 to index
    %c0_16 = arith.constant 0 : index
    %39 = vector.load %arg8[%38, %c0_16] : memref<192x8xf32, #tpu.memory_space<vmem>>, vector<32x8xf32>
    tpu.vector_store %arg8[%38, %c0_16], %37 {strides = array<i32>} : memref<192x8xf32, #tpu.memory_space<vmem>>, vector<32x8xf32>,
    %40 = arith.truncf %37 : vector<32x8xf32> to vector<32x8xbf16>
    %c0_17 = arith.constant 0 : index
    %c0_18 = arith.constant 0 : index
    %c0_19 = arith.constant 0 : index
    %41 = vector.load %arg5[%c0_17, %c0_18, %c0_19] : memref<1x8x128xbf16, #tpu.memory_space<vmem>>, vector<1x8x128xbf16>
    %42 = vector.shape_cast %41 : vector<1x8x128xbf16> to vector<8x128xbf16>
    %cst_20 = arith.constant dense<0.000000e+00> : vector<32x128xf32>
    %43 = tpu.matmul %40, %42, %cst_20 {dimension_numbers = #tpu.dot_dimension_numbers<[1], [0], [0], [1], [0, 0, 1, 1], [], []>} : vector<32x8xbf16>, vector<8x128xbf16>, vector<32x128xf32> -> vector<32x128xf32>
    %c0_i32_21 = arith.constant 0 : i32
    %44 = arith.cmpi eq, %arg0, %c0_i32_21 : i32
    %45 = arith.extui %44 : i1 to i32
    %c0_i32_22 = arith.constant 0 : i32
    %46 = arith.cmpi ne, %45, %c0_i32_22 : i32
    scf.if %46 {
      %58 = arith.index_cast %1 : i32 to index
      %c0_30 = arith.constant 0 : index
      %59 = vector.load %arg3[%58, %c0_30] : memref<96x8xbf16, #tpu.memory_space<vmem>>, vector<32x8xbf16>
      %c0_31 = arith.constant 0 : index
      %c0_32 = arith.constant 0 : index
      %60 = vector.load %arg4[%c0_31, %c0_32] : memref<8x128xbf16, #tpu.memory_space<vmem>>, vector<8x128xbf16>
      %cst_33 = arith.constant dense<0.000000e+00> : vector<32x128xf32>
      %61 = tpu.matmul %59, %60, %cst_33 {dimension_numbers = #tpu.dot_dimension_numbers<[1], [0], [0], [1], [0, 0, 1, 1], [], []>} : vector<32x8xbf16>, vector<8x128xbf16>, vector<32x128xf32> -> vector<32x128xf32>
      %62 = arith.addf %43, %61 : vector<32x128xf32>
      %63 = arith.index_cast %1 : i32 to index
      %c0_34 = arith.constant 0 : index
      %64 = vector.load %arg9[%63, %c0_34] : memref<96x128xf32, #tpu.memory_space<vmem>>, vector<32x128xf32>
      tpu.vector_store %arg9[%63, %c0_34], %62 {strides = array<i32>} : memref<96x128xf32, #tpu.memory_space<vmem>>, vector<32x128xf32>,
    } else {
    }
    %c0_i32_23 = arith.constant 0 : i32
    %47 = arith.cmpi sgt, %arg0, %c0_i32_23 : i32
    %48 = arith.extui %47 : i1 to i32
    %c0_i32_24 = arith.constant 0 : i32
    %49 = arith.cmpi ne, %48, %c0_i32_24 : i32
    scf.if %49 {
      %58 = arith.index_cast %1 : i32 to index
      %c0_30 = arith.constant 0 : index
      %59 = vector.load %arg9[%58, %c0_30] : memref<96x128xf32, #tpu.memory_space<vmem>>, vector<32x128xf32>
      %60 = arith.addf %59, %43 : vector<32x128xf32>
      %61 = arith.index_cast %1 : i32 to index
      %c0_31 = arith.constant 0 : index
      %62 = vector.load %arg9[%61, %c0_31] : memref<96x128xf32, #tpu.memory_space<vmem>>, vector<32x128xf32>
      tpu.vector_store %arg9[%61, %c0_31], %60 {strides = array<i32>} : memref<96x128xf32, #tpu.memory_space<vmem>>, vector<32x128xf32>,
    } else {
    }
    %50 = arith.index_cast %1 : i32 to index
    %c0_25 = arith.constant 0 : index
    %51 = vector.load %arg9[%50, %c0_25] : memref<96x128xf32, #tpu.memory_space<vmem>>, vector<32x128xf32>
    %c2_i32_26 = arith.constant 2 : i32
    %52 = arith.cmpi slt, %arg0, %c2_i32_26 : i32
    %53 = arith.extui %52 : i1 to i32
    %c0_i32_27 = arith.constant 0 : i32
    %54 = arith.cmpi ne, %53, %c0_i32_27 : i32
    scf.if %54 {
      %c0_30 = arith.constant 0 : index
      %c0_31 = arith.constant 0 : index
      %58 = vector.load %arg7[%c0_30, %c0_31] : memref<32x128xf32, #tpu.memory_space<vmem>>, vector<32x128xf32>
      tpu.vector_store %arg7[%c0_30, %c0_31], %51 {strides = array<i32>} : memref<32x128xf32, #tpu.memory_space<vmem>>, vector<32x128xf32>,
    } else {
    }
    %c2_i32_28 = arith.constant 2 : i32
    %55 = arith.cmpi eq, %arg0, %c2_i32_28 : i32
    %56 = arith.extui %55 : i1 to i32
    %c0_i32_29 = arith.constant 0 : i32
    %57 = arith.cmpi ne, %56, %c0_i32_29 : i32
    scf.if %57 {
      %c0_30 = arith.constant 0 : index
      %c0_31 = arith.constant 0 : index
      %58 = vector.load %arg6[%c0_30, %c0_31] : memref<1x128xf32, #tpu.memory_space<vmem>>, vector<1x128xf32>
      %59 = vector.broadcast %58 : vector<1x128xf32> to vector<32x128xf32>
      %60 = arith.addf %51, %59 : vector<32x128xf32>
      %cst_32 = arith.constant 0.000000e+00 : f32
      %61 = vector.broadcast %cst_32 : f32 to vector<32x128xf32>
      %62 = arith.maximumf %60, %61 : vector<32x128xf32>
      %c0_33 = arith.constant 0 : index
      %c0_34 = arith.constant 0 : index
      %63 = vector.load %arg7[%c0_33, %c0_34] : memref<32x128xf32, #tpu.memory_space<vmem>>, vector<32x128xf32>
      tpu.vector_store %arg7[%c0_33, %c0_34], %62 {strides = array<i32>} : memref<32x128xf32, #tpu.memory_space<vmem>>, vector<32x128xf32>,
    } else {
    }
    return
  }
  func.func @transform_0(%arg0: i32, %arg1: i32) -> (i32, i32) {
    %c0_i32 = arith.constant 0 : i32
    %c0_i32_0 = arith.constant 0 : i32
    return %arg1, %c0_i32 : i32, i32
  }
  func.func @transform_1(%arg0: i32, %arg1: i32) -> (i32, i32) {
    %c0_i32 = arith.constant 0 : i32
    %c0_i32_0 = arith.constant 0 : i32
    %c0_i32_1 = arith.constant 0 : i32
    return %c0_i32, %c0_i32_0 : i32, i32
  }
  func.func @transform_2(%arg0: i32, %arg1: i32) -> (i32, i32) {
    %c0_i32 = arith.constant 0 : i32
    %c0_i32_0 = arith.constant 0 : i32
    %c0_i32_1 = arith.constant 0 : i32
    return %c0_i32, %c0_i32_0 : i32, i32
  }
  func.func @transform_3(%arg0: i32, %arg1: i32) -> (i32, i32, i32) {
    %c0_i32 = arith.constant 0 : i32
    %c0_i32_0 = arith.constant 0 : i32
    %c0_i32_1 = arith.constant 0 : i32
    return %arg0, %c0_i32, %c0_i32_0 : i32, i32, i32
  }
  func.func @transform_4(%arg0: i32, %arg1: i32) -> (i32, i32) {
    %c0_i32 = arith.constant 0 : i32
    %c0_i32_0 = arith.constant 0 : i32
    %c0_i32_1 = arith.constant 0 : i32
    return %c0_i32, %c0_i32_0 : i32, i32
  }
  func.func @transform_5(%arg0: i32, %arg1: i32) -> (i32, i32) {
    %c0_i32 = arith.constant 0 : i32
    %c0_i32_0 = arith.constant 0 : i32
    return %arg1, %c0_i32 : i32, i32
  }
}

</mosaic_0001>

<llo_original>
// kernel: tpu_custom_call.1
$region0: #{tpu_custom_call.1}
  #allocation0 [shape = 'u32[]', space=smem, size = 0x4, offset = 0x4, fixed_abs, tag = 'smem constant byte address 0x4 - core index']
  #allocation1 [shape = 'u32[144,128]{1,0:T(1,128)}', space=vmem, size = 0x12000, scoped, tag = 'internal scratch']
  #allocation2 [shape = 'f32[192,8]{1,0:T(8,128)}', space=vmem, size = 0x18000, scoped, tag = 'scratch operand']
  #allocation3 [shape = 'f32[96,128]{1,0:T(8,128)}', space=vmem, size = 0xc000, scoped, tag = 'scratch operand']
  %s0 = inlined_call_operand.vmem [shape: bf16[96,96], index: 0, kind: input, shape index: {}]
  %s1 = inlined_call_operand.vmem [shape: bf16[96,8], index: 1, kind: input, shape index: {}]
  %s2 = inlined_call_operand.hbm [shape: bf16[8,128], index: 2, kind: input, shape index: {}]
  %s3 = inlined_call_operand.vmem [shape: bf16[3,8,128], index: 3, kind: input, shape index: {}]
  %s4 = inlined_call_operand.vmem [shape: f32[1,128], index: 4, kind: input, shape index: {}]
  %s5 = inlined_call_operand.hbm [shape: f32[96,128], index: 5, kind: output, shape index: {}]
  %s6 = sld [smem:[#allocation0]]
  $region77: #{tpu_custom_call.1} parent=0
    _
  %s8 = ssub.s32 1, %s6
  %s9 = scalar_select 0, %s8, %s6
  $region1: #{tpu_custom_call.1} parent=0
    #allocation4 [shape = 'u8[2048]{0}', space=vmem, size = 0x800, scoped, tag = 'input window, operand 2, single buffered']
    #allocation5 [shape = 's32[2]{0}', space=sflag, size = 0x8, scoped, tag = 'scoped memory for tpu_custom_call.1']
    #allocation6 [shape = 's32[2]{0}', space=sflag, size = 0x8, scoped, tag = 'scoped memory for tpu_custom_call.1']
    #allocation7 [shape = 'u8[32768]{0}', space=vmem, size = 0x8000, scoped, tag = 'output window, operand 0']
    %10 = vsyncpa [#allocation5], 0
    %11 = vsyncpa [#allocation6], 0
    %s12 = scalar_lea.sflag [#allocation6], 1
    %13 = vsyncpa %s12, 0
    loop: start=0, step=1, limit=11
    $region2: #{tpu_custom_call.1} parent=1 // loop_pre_header
      _
    $region3: #{tpu_custom_call.1} parent=1 // loop_header
      %s15 = sphi 0, %s19
      %p16 = scmp.ge.s32.totalorder %s15, 11
      %s22 = sphi 0, %s34
      %s23 = sphi 0, %s30
      %s24 = sphi 0, %s22
      %s25 = sphi 0, %s23
      %s26 = sphi 0, %s24
      %s27 = sphi 0, %s25
      %s37 = sphi 0, %s39
      %s40 = sphi 0, %s37
      %s41 = sphi 0, %s40
      %s57 = sphi 0, %s41
      %s61 = sphi 0, %s61
      %s63 = sphi 0, %s61
      %s64 = sphi 0, %s63
      %s78 = sphi 0, %s64
      %s82 = sphi 0, %s82
      %s84 = sphi 0, %s82
      %s85 = sphi 0, %s84
      %s99 = sphi 0, %s85
      %s105 = sphi 0, %s107
      %s108 = sphi 0, %s105
      %s109 = sphi 0, %s108
      %s125 = sphi 0, %s109
      %s129 = sphi 0, %s129
      %s131 = sphi 0, %s129
      %s132 = sphi 0, %s131
      %s146 = sphi 0, %s132
      %s152 = sphi 0, %s154
      %s155 = sphi 0, %s152
      %s156 = sphi 0, %s155
      %s172 = sphi 0, %s156
    $region4: #{tpu_custom_call.1} parent=1 // loop_header_branch
      %18 = sbr.rel (%p16) target = $region8
    $region5: #{tpu_custom_call.1} parent=1 // loop_body
      %s20 = ssub.s32 %s15, 1
      %s21 = ssub.s32 %s15, 2
      %s28 = sadd.s32 1, %s23
      %p29 = scmp.ge.s32.totalorder %s28, 3
      %s30 = scalar_select %p29, 0, %s28
      %s31 = sadd.s32 1, %s22
      %s32 = scalar_select %p29, %s31, %s22
      %p33 = scmp.ge.s32.totalorder %s32, 3
      %s34 = scalar_select %p33, 0, %s32
      %s35 = ssub.s32 %s23, %s30
      %p36 = scmp.eq.s32.totalorder %s35, 0
      %s38 = sadd.s32 %s37, 1
      %s39 = scalar_select %p36, %s37, %s38
      %p42 = pneg %p36
      %p43 = scmp.eq.s32.totalorder %s15, 8
      %p44 = por %p42, %p43
      %p45 = scmp.ne.s32.totalorder %s37, %s40
      %p46 = scmp.eq.s32.totalorder %s15, 0
      %p47 = por %p45, %p46
      %p48 = scmp.ne.s32.totalorder %s37, %s40
      %p49 = scmp.eq.s32.totalorder %s20, 8
      %p50 = por %p48, %p49
      %p51 = scmp.ne.s32.totalorder %s40, %s41
      %p52 = scmp.eq.s32.totalorder %s20, 0
      %p53 = por %p51, %p52
      %p54 = scmp.ne.s32.totalorder %s40, %s41
      %p55 = scmp.eq.s32.totalorder %s21, 8
      %p56 = por %p54, %p55
      %p58 = scmp.ne.s32.totalorder %s41, %s57
      %p59 = scmp.eq.s32.totalorder %s21, 0
      %p60 = por %p58, %p59
      %s62 = sadd.s32 %s61, 1
      %p65 = scmp.eq.s32.totalorder %s15, 8
      %p66 = scmp.ne.s32.totalorder %s61, %s63
      %p67 = scmp.eq.s32.totalorder %s15, 0
      %p68 = por %p66, %p67
      %p69 = scmp.ne.s32.totalorder %s61, %s63
      %p70 = scmp.eq.s32.totalorder %s20, 8
      %p71 = por %p69, %p70
      %p72 = scmp.ne.s32.totalorder %s63, %s64
      %p73 = scmp.eq.s32.totalorder %s20, 0
      %p74 = por %p72, %p73
      %p75 = scmp.ne.s32.totalorder %s63, %s64
      %p76 = scmp.eq.s32.totalorder %s21, 8
      %p77 = por %p75, %p76
      %p79 = scmp.ne.s32.totalorder %s64, %s78
      %p80 = scmp.eq.s32.totalorder %s21, 0
      %p81 = por %p79, %p80
      %s83 = sadd.s32 %s82, 1
      %p86 = scmp.eq.s32.totalorder %s15, 8
      %p87 = scmp.ne.s32.totalorder %s82, %s84
      %p88 = scmp.eq.s32.totalorder %s15, 0
      %p89 = por %p87, %p88
      %p90 = scmp.ne.s32.totalorder %s82, %s84
      %p91 = scmp.eq.s32.totalorder %s20, 8
      %p92 = por %p90, %p91
      %p93 = scmp.ne.s32.totalorder %s84, %s85
      %p94 = scmp.eq.s32.totalorder %s20, 0
      %p95 = por %p93, %p94
      %p96 = scmp.ne.s32.totalorder %s84, %s85
      %p97 = scmp.eq.s32.totalorder %s21, 8
      %p98 = por %p96, %p97
      %p100 = scmp.ne.s32.totalorder %s85, %s99
      %p101 = scmp.eq.s32.totalorder %s21, 0
      %p102 = por %p100, %p101
      %s103 = ssub.s32 %s22, %s34
      %p104 = scmp.eq.s32.totalorder %s103, 0
      %s106 = sadd.s32 %s105, 1
      %s107 = scalar_select %p104, %s105, %s106
      %p110 = pneg %p104
      %p111 = scmp.eq.s32.totalorder %s15, 8
      %p112 = por %p110, %p111
      %p113 = scmp.ne.s32.totalorder %s105, %s108
      %p114 = scmp.eq.s32.totalorder %s15, 0
      %p115 = por %p113, %p114
      %p116 = scmp.ne.s32.totalorder %s105, %s108
      %p117 = scmp.eq.s32.totalorder %s20, 8
      %p118 = por %p116, %p117
      %p119 = scmp.ne.s32.totalorder %s108, %s109
      %p120 = scmp.eq.s32.totalorder %s20, 0
      %p121 = por %p119, %p120
      %p122 = scmp.ne.s32.totalorder %s108, %s109
      %p123 = scmp.eq.s32.totalorder %s21, 8
      %p124 = por %p122, %p123
      %p126 = scmp.ne.s32.totalorder %s109, %s125
      %p127 = scmp.eq.s32.totalorder %s21, 0
      %p128 = por %p126, %p127
      %s130 = sadd.s32 %s129, 1
      %p133 = scmp.eq.s32.totalorder %s15, 8
      %p134 = scmp.ne.s32.totalorder %s129, %s131
      %p135 = scmp.eq.s32.totalorder %s15, 0
      %p136 = por %p134, %p135
      %p137 = scmp.ne.s32.totalorder %s129, %s131
      %p138 = scmp.eq.s32.totalorder %s20, 8
      %p139 = por %p137, %p138
      %p140 = scmp.ne.s32.totalorder %s131, %s132
      %p141 = scmp.eq.s32.totalorder %s20, 0
      %p142 = por %p140, %p141
      %p143 = scmp.ne.s32.totalorder %s131, %s132
      %p144 = scmp.eq.s32.totalorder %s21, 8
      %p145 = por %p143, %p144
      %p147 = scmp.ne.s32.totalorder %s132, %s146
      %p148 = scmp.eq.s32.totalorder %s21, 0
      %p149 = por %p147, %p148
      %s150 = ssub.s32 %s23, %s30
      %p151 = scmp.eq.s32.totalorder %s150, 0
      %s153 = sadd.s32 %s152, 1
      %s154 = scalar_select %p151, %s152, %s153
      %p157 = pneg %p151
      %p158 = scmp.eq.s32.totalorder %s15, 8
      %p159 = por %p157, %p158
      %p160 = scmp.ne.s32.totalorder %s152, %s155
      %p161 = scmp.eq.s32.totalorder %s15, 0
      %p162 = por %p160, %p161
      %p163 = scmp.ne.s32.totalorder %s152, %s155
      %p164 = scmp.eq.s32.totalorder %s20, 8
      %p165 = por %p163, %p164
      %p166 = scmp.ne.s32.totalorder %s155, %s156
      %p167 = scmp.eq.s32.totalorder %s20, 0
      %p168 = por %p166, %p167
      %p169 = scmp.ne.s32.totalorder %s155, %s156
      %p170 = scmp.eq.s32.totalorder %s21, 8
      %p171 = por %p169, %p170
      %p173 = scmp.ne.s32.totalorder %s156, %s172
      %p174 = scmp.eq.s32.totalorder %s21, 0
      %p175 = por %p173, %p174
      %p176 = scmp.le.s32.totalorder 1, %s15
      %p177 = scmp.lt.s32.totalorder %s15, 10
      %p178 = pnand %p176, %p177
      %p179 = pneg %p178
      // Predicated region
      $region9: #{tpu_custom_call.1} parent=5 // pred_check
        _
      $region10: #{tpu_custom_call.1} parent=5 // pred_check_branch
        %181 = sbr.rel (%p178) target = $region12
      $region11: #{tpu_custom_call.1} parent=5 // pred_region
        %s182 = ssub.s32 %s15, 1
        // Predicated region
        $region13: #{tpu_custom_call.1} parent=11 // pred_check
          %p183 = pneg %p74
        $region14: #{tpu_custom_call.1} parent=11 // pred_check_branch
          %185 = sbr.rel (%p183) target = $region16
        $region15: #{tpu_custom_call.1} parent=11 // pred_region
          _
        $region16: #{tpu_custom_call.1} parent=11 // pred_fallthru
          _
        // Predicated region
        $region17: #{tpu_custom_call.1} parent=11 // pred_check
          %p186 = pneg %p95
        $region18: #{tpu_custom_call.1} parent=11 // pred_check_branch
          %188 = sbr.rel (%p186) target = $region20
        $region19: #{tpu_custom_call.1} parent=11 // pred_region
          %s190 = ssub.s32 64, 64
          %191 = vsyncadd [#allocation5], %s190
          %s193 = sshll.u32 [#allocation4], 4
          %s194 = int_to_ptr.vmem [resolvable:$true] %s193
          %196 = dma.hbm_to_vmem [thread:$0]  %s2, 64, %s194, [#allocation5]
        $region20: #{tpu_custom_call.1} parent=11 // pred_fallthru
          _
        // Predicated region
        $region21: #{tpu_custom_call.1} parent=11 // pred_check
          %p197 = pneg %p142
        $region22: #{tpu_custom_call.1} parent=11 // pred_check_branch
          %199 = sbr.rel (%p197) target = $region24
        $region23: #{tpu_custom_call.1} parent=11 // pred_region
          _
        $region24: #{tpu_custom_call.1} parent=11 // pred_fallthru
          _
      $region12: #{tpu_custom_call.1} parent=5 // pred_fallthru
        _
      %p200 = scmp.lt.s32.totalorder %s15, 9
      // Predicated region
      $region25: #{tpu_custom_call.1} parent=5 // pred_check
        %p201 = pneg %p200
      $region26: #{tpu_custom_call.1} parent=5 // pred_check_branch
        %203 = sbr.rel (%p201) target = $region28
      $region27: #{tpu_custom_call.1} parent=5 // pred_region
        // Predicated region
        $region29: #{tpu_custom_call.1} parent=27 // pred_check
          %p204 = pneg %p47
        $region30: #{tpu_custom_call.1} parent=27 // pred_check_branch
          %206 = sbr.rel (%p204) target = $region32
        $region31: #{tpu_custom_call.1} parent=27 // pred_region
          %s207 = smul.u32 4, %s23
          %p208 = scmp.lt.s32.totalorder %s207, 11
          %s209 = scalar_select %p208, %s207, 11
          %s210 = smul.addr %s209, 4
          %s211 = scalar_lea.vmem %s0, %s210
          %s212 = smul.u32 4, %s23
        $region32: #{tpu_custom_call.1} parent=27 // pred_fallthru
          _
        // Predicated region
        $region33: #{tpu_custom_call.1} parent=27 // pred_check
          %p213 = pneg %p115
        $region34: #{tpu_custom_call.1} parent=27 // pred_check_branch
          %215 = sbr.rel (%p213) target = $region36
        $region35: #{tpu_custom_call.1} parent=27 // pred_region
          %p216 = scmp.lt.s32.totalorder %s22, 2
          %s217 = scalar_select %p216, %s22, 2
          %s218 = smul.addr %s217, 4
          %s219 = scalar_lea.vmem %s3, %s218
        $region36: #{tpu_custom_call.1} parent=27 // pred_fallthru
          _
      $region28: #{tpu_custom_call.1} parent=5 // pred_fallthru
        _
      %p220 = scmp.le.s32.totalorder 1, %s15
      %p221 = scmp.lt.s32.totalorder %s15, 10
      %p222 = pnand %p220, %p221
      %p223 = pneg %p222
      // Predicated region
      $region37: #{tpu_custom_call.1} parent=5 // pred_check
        _
      $region38: #{tpu_custom_call.1} parent=5 // pred_check_branch
        %225 = sbr.rel (%p222) target = $region40
      $region39: #{tpu_custom_call.1} parent=5 // pred_region
        %s226 = ssub.s32 %s15, 1
        // Predicated region
        $region41: #{tpu_custom_call.1} parent=39 // pred_check
          %p227 = pneg %p95
        $region42: #{tpu_custom_call.1} parent=39 // pred_check_branch
          %229 = sbr.rel (%p227) target = $region44
        $region43: #{tpu_custom_call.1} parent=39 // pred_region
          %230 = dma.done [#allocation5], 64
        $region44: #{tpu_custom_call.1} parent=39 // pred_fallthru
          _
        %s231 = smul.u32 4, %s25
        %p232 = scmp.lt.s32.totalorder %s231, 11
        %s233 = scalar_select %p232, %s231, 11
        %s234 = smul.addr %s233, 4
        %s235 = scalar_lea.vmem %s0, %s234
        %p236 = pneg %p53
        %p237 = pneg %p50
        %p238 = pneg %p74
        %p239 = pneg %p71
        %p240 = pneg %p95
        %p241 = pneg %p92
        %p242 = scmp.lt.s32.totalorder %s24, 2
        %s243 = scalar_select %p242, %s24, 2
        %s244 = smul.addr %s243, 4
        %s245 = scalar_lea.vmem %s3, %s244
        %p246 = pneg %p121
        %p247 = pneg %p118
        %p248 = pneg %p142
        %p249 = pneg %p139
        %p250 = pneg %p168
        %p251 = pneg %p165
        %s252 = sand.u32 %s155, 1
        %s253 = scalar_lea.sflag [#allocation6], %s252
        %s254 = sand.u32 %s155, 1
        %s255 = smul.addr %s254, 32
        %s256 = scalar_lea.vmem [#allocation7], %s255
        %s257 = smul.u32 4, %s25
        %p258 = scmp.lt.s32.totalorder %s257, 11
        %s259 = scalar_select %p258, %s257, 11
        %s260 = smul.addr %s259, 4
        %s261 = scalar_lea.vmem %s0, %s260
        %s262 = smul.u32 4, %s25
        %p263 = scmp.lt.s32.totalorder %s24, 2
        %s264 = scalar_select %p263, %s24, 2
        %s265 = smul.addr %s264, 4
        %s266 = scalar_lea.vmem %s3, %s265
        %s267 = smul.u32 4, %s25
        %s269 = smul.u32 %s25, 32
        %p270 = scmp.eq.s32.totalorder %s24, 0
        %p271 = scmp.eq.s32.totalorder %s25, 0
        %p272 = pnand %p270, %p271
        %p273 = pneg %p272
        // Predicated region
        $region45: #{tpu_custom_call.1} parent=39 // pred_check
          _
        $region46: #{tpu_custom_call.1} parent=39 // pred_check_branch
          %275 = sbr.rel (%p272) target = $region48
        $region47: #{tpu_custom_call.1} parent=39 // pred_region
          %v276 = vld [vmem:[%s1] sm:$0xf]
          %v277 = vld [vmem:[%s1 + $0x4] sm:$0xf]
          %v278 = vld [vmem:[%s1 + $0x8] sm:$0xf]
          %v279 = vld [vmem:[%s1 + $0xc] sm:$0xf]
          %v280 = vld [vmem:[%s1 + $0x10] sm:$0xf]
          %v281 = vld [vmem:[%s1 + $0x14] sm:$0xf]
          %v282 = vld [vmem:[%s1 + $0x18] sm:$0xf]
          %v283 = vld [vmem:[%s1 + $0x1c] sm:$0xf]
          %v284 = vld [vmem:[%s1 + $0x20] sm:$0xf]
          %v285 = vld [vmem:[%s1 + $0x24] sm:$0xf]
          %v286 = vld [vmem:[%s1 + $0x28] sm:$0xf]
          %v287 = vld [vmem:[%s1 + $0x2c] sm:$0xf]
          %v288 = vunpack.c.l.bf16 %v276
          %v289 = vunpack.c.l.bf16 %v277
          %v290 = vunpack.c.l.bf16 %v278
          %v291 = vunpack.c.l.bf16 %v279
          %v292 = vunpack.c.l.bf16 %v280
          %v293 = vunpack.c.l.bf16 %v281
          %v294 = vunpack.c.l.bf16 %v282
          %v295 = vunpack.c.l.bf16 %v283
          %v296 = vunpack.c.l.bf16 %v284
          %v297 = vunpack.c.l.bf16 %v285
          %v298 = vunpack.c.l.bf16 %v286
          %v299 = vunpack.c.l.bf16 %v287
          %vm300 = vcmask 64512
          %301 = vst.msk [vmem:[#allocation2 + $0x60] sm:$0xff] %vm300, %v288
          %302 = vst.msk [vmem:[#allocation2 + $0x68] sm:$0xff] %vm300, %v289
          %303 = vst.msk [vmem:[#allocation2 + $0x70] sm:$0xff] %vm300, %v290
          %304 = vst.msk [vmem:[#allocation2 + $0x78] sm:$0xff] %vm300, %v291
          %305 = vst.msk [vmem:[#allocation2 + $0x80] sm:$0xff] %vm300, %v292
          %306 = vst.msk [vmem:[#allocation2 + $0x88] sm:$0xff] %vm300, %v293
          %307 = vst.msk [vmem:[#allocation2 + $0x90] sm:$0xff] %vm300, %v294
          %308 = vst.msk [vmem:[#allocation2 + $0x98] sm:$0xff] %vm300, %v295
          %309 = vst.msk [vmem:[#allocation2 + $0xa0] sm:$0xff] %vm300, %v296
          %310 = vst.msk [vmem:[#allocation2 + $0xa8] sm:$0xff] %vm300, %v297
          %311 = vst.msk [vmem:[#allocation2 + $0xb0] sm:$0xff] %vm300, %v298
          %312 = vst.msk [vmem:[#allocation2 + $0xb8] sm:$0xff] %vm300, %v299
        $region48: #{tpu_custom_call.1} parent=39 // pred_fallthru
          _
        %s313 = sadd.s32 %s24, 1
        %p314 = scmp.lt.s32.totalorder %s313, 0
        %s315 = ssub.s32 0, %s313
        %s316 = scalar_select %p314, %s315, %s313
        %s317 = sand.u32 %s316, 1
        %s318 = ssub.s32 0, %s317
        %s319 = scalar_select %p314, %s318, %s317
        %p320 = scmp.ne.s32.totalorder %s319, 0
        %p321 = scmp.lt.s32.totalorder %s319, 0
        %p322 = pnand %p321, %p320
        %p323 = pneg %p322
        %s324 = sadd.s32 %s319, 2
        %s325 = scalar_select %p323, %s324, %s319
        %s326 = smul.u32 %s325, 96
        %p327 = scmp.lt.s32.totalorder %s24, 0
        %s328 = ssub.s32 0, %s24
        %s329 = scalar_select %p327, %s328, %s24
        %s330 = sand.u32 %s329, 1
        %s331 = ssub.s32 0, %s330
        %s332 = scalar_select %p327, %s331, %s330
        %p333 = scmp.ne.s32.totalorder %s332, 0
        %p334 = scmp.lt.s32.totalorder %s332, 0
        %p335 = pnand %p334, %p333
        %p336 = pneg %p335
        %s337 = sadd.s32 %s332, 2
        %s338 = scalar_select %p336, %s337, %s332
        %s339 = smul.u32 %s338, 96
        %s340 = sadd.s32 %s339, %s269
        %s341 = scalar_lea.vmem [#allocation2], %s326
        %v342 = vld [vmem:[%s341] sm:$0xff]
        %v343 = vld [vmem:[%s341 + $0x8] sm:$0xff]
        %v344 = vld [vmem:[%s341 + $0x10] sm:$0xff]
        %v345 = vld [vmem:[%s341 + $0x18] sm:$0xff]
        %v346 = vld [vmem:[%s341 + $0x20] sm:$0xff]
        %v347 = vld [vmem:[%s341 + $0x28] sm:$0xff]
        %v348 = vld [vmem:[%s341 + $0x30] sm:$0xff]
        %v349 = vld [vmem:[%s341 + $0x38] sm:$0xff]
        %v350 = vld [vmem:[%s341 + $0x40] sm:$0xff]
        %v351 = vld [vmem:[%s341 + $0x48] sm:$0xff]
        %v352 = vld [vmem:[%s341 + $0x50] sm:$0xff]
        %v353 = vld [vmem:[%s341 + $0x58] sm:$0xff]
        %v354 = vld [vmem:[%s261] sm:$0xf]
        %v355 = vld [vmem:[%s261 + $0x4] sm:$0xf]
        %v356 = vld [vmem:[%s261 + $0x8] sm:$0xf]
        %v357 = vld [vmem:[%s261 + $0xc] sm:$0xf]
        %v358 = vpack.c.bf16 %v343, %v342
        %v359 = vpack.c.bf16 %v345, %v344
        %v360 = vpack.c.bf16 %v347, %v346
        %v361 = vpack.c.bf16 %v349, %v348
        %v362 = vpack.c.bf16 %v351, %v350
        %v363 = vpack.c.bf16 %v353, %v352
        %v368 = vunpack.c.l.b16 %v354
        %v369 = vunpack.c.l.b16 %v355
        %v370 = vunpack.c.l.b16 %v356
        %v371 = vunpack.c.l.b16 %v357
        %v372 = vpack.c.b16 %v369, %v368
        %v373 = vpack.c.b16 %v371, %v370
        %vm374 = vcmask 785408
        %v376 = vsel %vm374, %v372, 0
        %v379 = vsel %vm374, %v373, 0
        %381 = vmatprep.subr.bf16.mxu0 0
        %382 = vmatpush1.bf16.msra.mxu0 %v358
        %383 = vmatprep.subr.bf16.mxu0 0
        %384 = vmatpush1.bf16.msra.mxu0 %v359
        %385 = vmatprep.subr.bf16.mxu0 0
        %386 = vmatpush1.bf16.msra.mxu0 %v360
        %387 = vmatprep.subr.bf16.mxu0 0
        %388 = vmatpush1.bf16.msra.mxu0 %v361
        %389 = vmatprep.subr.bf16.mxu0 0
        %390 = vmatpush1.bf16.msra.mxu0 %v362
        %391 = vmatprep.subr.bf16.mxu0 0
        %392 = vmatpush1.bf16.msra.mxu0 %v363
        %393 = vmatprep.subr.bf16.mxu0 0
        %394 = vmatpush1.bf16.msra.mxu0 0
        %395 = vmatprep.subr.bf16.mxu0 0
        %396 = vmatpush1.bf16.msra.mxu0 0
        %397 = vmatprep.subr.bf16.mxu0 0
        %398 = vmatpush1.bf16.msra.mxu0 0
        %399 = vmatprep.subr.bf16.mxu0 0
        %400 = vmatpush1.bf16.msra.mxu0 0
        %401 = vmatprep.subr.bf16.mxu0 0
        %402 = vmatpush1.bf16.msra.mxu0 0
        %403 = vmatprep.subr.bf16.mxu0 0
        %404 = vmatpush1.bf16.msra.mxu0 0
        %405 = vmatprep.subr.bf16.mxu0 0
        %406 = vmatpush1.bf16.msra.mxu0 0
        %407 = vmatprep.subr.bf16.mxu0 0
        %408 = vmatpush1.bf16.msra.mxu0 0
        %409 = vmatprep.subr.bf16.mxu0 0
        %410 = vmatpush1.bf16.msra.mxu0 0
        %411 = vmatprep.subr.bf16.mxu0 0
        %412 = vmatpush1.bf16.msra.mxu0 0
        %413 = vmatprep.mubr.bf16.mxu0 0
        %414 = vmatmul.mubr.bf16.gmra.mrb[0].mxu0 %v376
        %v415 = vpop.f32.mrb[0].mxu0
        %v416 = vadd.f32 0.0, %v415
        %v417 = vpop.f32.mrb[0].mxu0
        %v418 = vpop.f32.mrb[0].mxu0
        %v419 = vadd.f32 0.0, %v418
        %v420 = vpop.f32.mrb[0].mxu0
        %421 = vmatprep.mubr.bf16.mxu0 0
        %422 = vmatmul.mubr.bf16.gmra.mrb[0].mxu0 %v379
        %v423 = vpop.f32.mrb[0].mxu0
        %v424 = vadd.f32 0.0, %v423
        %v425 = vpop.f32.mrb[0].mxu0
        %v426 = vpop.f32.mrb[0].mxu0
        %v427 = vadd.f32 0.0, %v426
        %v428 = vpop.f32.mrb[0].mxu0
        %429 = vdwg.mxu0
        %s430 = scalar_lea.vmem [#allocation2], %s340
        %vm431 = vcmask 64512
        %432 = vst.msk [vmem:[%s430] sm:$0xff] %vm431, %v416
        %433 = vst.msk [vmem:[%s430 + $0x8] sm:$0xff] %vm431, %v419
        %434 = vst.msk [vmem:[%s430 + $0x10] sm:$0xff] %vm431, %v424
        %435 = vst.msk [vmem:[%s430 + $0x18] sm:$0xff] %vm431, %v427
        %v436 = vpack.c.bf16 %v419, %v416
        %v437 = vpack.c.bf16 %v427, %v424
        %v438 = vld [vmem:[%s266] sm:$0xf]
        %v440 = vsel %vm431, %v436, 0
        %v443 = vsel %vm431, %v437, 0
        %vm445 = vcmask 1043456
        %v447 = vsel %vm445, %v438, 0
        %449 = vmatprep.subr.bf16.mxu0 0
        %450 = vmatpush1.bf16.msra.mxu0 %v447
        %451 = vmatprep.subr.bf16.mxu0 0
        %452 = vmatpush1.bf16.msra.mxu0 0
        %453 = vmatprep.subr.bf16.mxu0 0
        %454 = vmatpush1.bf16.msra.mxu0 0
        %455 = vmatprep.subr.bf16.mxu0 0
        %456 = vmatpush1.bf16.msra.mxu0 0
        %457 = vmatprep.subr.bf16.mxu0 0
        %458 = vmatpush1.bf16.msra.mxu0 0
        %459 = vmatprep.subr.bf16.mxu0 0
        %460 = vmatpush1.bf16.msra.mxu0 0
        %461 = vmatprep.subr.bf16.mxu0 0
        %462 = vmatpush1.bf16.msra.mxu0 0
        %463 = vmatprep.subr.bf16.mxu0 0
        %464 = vmatpush1.bf16.msra.mxu0 0
        %465 = vmatprep.subr.bf16.mxu0 0
        %466 = vmatpush1.bf16.msra.mxu0 0
        %467 = vmatprep.subr.bf16.mxu0 0
        %468 = vmatpush1.bf16.msra.mxu0 0
        %469 = vmatprep.subr.bf16.mxu0 0
        %470 = vmatpush1.bf16.msra.mxu0 0
        %471 = vmatprep.subr.bf16.mxu0 0
        %472 = vmatpush1.bf16.msra.mxu0 0
        %473 = vmatprep.subr.bf16.mxu0 0
        %474 = vmatpush1.bf16.msra.mxu0 0
        %475 = vmatprep.subr.bf16.mxu0 0
        %476 = vmatpush1.bf16.msra.mxu0 0
        %477 = vmatprep.subr.bf16.mxu0 0
        %478 = vmatpush1.bf16.msra.mxu0 0
        %479 = vmatprep.subr.bf16.mxu0 0
        %480 = vmatpush1.bf16.msra.mxu0 0
        %481 = vmatprep.mubr.bf16.mxu0 0
        %482 = vmatmul.mubr.bf16.gmra.mrb[0].mxu0 %v440
        %v483 = vpop.f32.mrb[0].mxu0
        %v484 = vadd.f32 0.0, %v483
        %v485 = vpop.f32.mrb[0].mxu0
        %v486 = vpop.f32.mrb[0].mxu0
        %v487 = vadd.f32 0.0, %v486
        %v488 = vpop.f32.mrb[0].mxu0
        %489 = vmatprep.mubr.bf16.mxu0 0
        %490 = vmatmul.mubr.bf16.gmra.mrb[0].mxu0 %v443
        %v491 = vpop.f32.mrb[0].mxu0
        %v492 = vadd.f32 0.0, %v491
        %v493 = vpop.f32.mrb[0].mxu0
        %v494 = vpop.f32.mrb[0].mxu0
        %v495 = vadd.f32 0.0, %v494
        %v496 = vpop.f32.mrb[0].mxu0
        %497 = vdwg.mxu0
        // Predicated region
        $region49: #{tpu_custom_call.1} parent=39 // pred_check
          %p498 = pneg %p270
        $region50: #{tpu_custom_call.1} parent=39 // pred_check_branch
          %500 = sbr.rel (%p498) target = $region52
        $region51: #{tpu_custom_call.1} parent=39 // pred_region
          %s501 = sshra.s32 %s269, 3
          %s502 = sand.u32 %s269, 7
          %s503 = smul.addr %s501, 4
          %s504 = scalar_lea.vmem %s1, %s503
          %v505 = vld [vmem:[%s504] sm:$0xf]
          %v506 = vld [vmem:[%s504 + $0x4] sm:$0xf]
          %v507 = vld [vmem:[%s504 + $0x8] sm:$0xf]
          %v508 = vld [vmem:[%s504 + $0xc] sm:$0xf]
          %v509 = vld [vmem:[#allocation4] sm:$0xf]
          %v514 = vunpack.c.l.b16 %v505
          %v515 = vunpack.c.l.b16 %v506
          %v516 = vunpack.c.l.b16 %v507
          %v517 = vunpack.c.l.b16 %v508
          %v518 = vpack.c.b16 %v515, %v514
          %v519 = vpack.c.b16 %v517, %v516
          %v521 = vsel %vm431, %v518, 0
          %v524 = vsel %vm431, %v519, 0
          %v527 = vsel %vm445, %v509, 0
          %529 = vmatprep.subr.bf16.mxu0 0
          %530 = vmatpush1.bf16.msra.mxu0 %v527
          %531 = vmatprep.subr.bf16.mxu0 0
          %532 = vmatpush1.bf16.msra.mxu0 0
          %533 = vmatprep.subr.bf16.mxu0 0
          %534 = vmatpush1.bf16.msra.mxu0 0
          %535 = vmatprep.subr.bf16.mxu0 0
          %536 = vmatpush1.bf16.msra.mxu0 0
          %537 = vmatprep.subr.bf16.mxu0 0
          %538 = vmatpush1.bf16.msra.mxu0 0
          %539 = vmatprep.subr.bf16.mxu0 0
          %540 = vmatpush1.bf16.msra.mxu0 0
          %541 = vmatprep.subr.bf16.mxu0 0
          %542 = vmatpush1.bf16.msra.mxu0 0
          %543 = vmatprep.subr.bf16.mxu0 0
          %544 = vmatpush1.bf16.msra.mxu0 0
          %545 = vmatprep.subr.bf16.mxu0 0
          %546 = vmatpush1.bf16.msra.mxu0 0
          %547 = vmatprep.subr.bf16.mxu0 0
          %548 = vmatpush1.bf16.msra.mxu0 0
          %549 = vmatprep.subr.bf16.mxu0 0
          %550 = vmatpush1.bf16.msra.mxu0 0
          %551 = vmatprep.subr.bf16.mxu0 0
          %552 = vmatpush1.bf16.msra.mxu0 0
          %553 = vmatprep.subr.bf16.mxu0 0
          %554 = vmatpush1.bf16.msra.mxu0 0
          %555 = vmatprep.subr.bf16.mxu0 0
          %556 = vmatpush1.bf16.msra.mxu0 0
          %557 = vmatprep.subr.bf16.mxu0 0
          %558 = vmatpush1.bf16.msra.mxu0 0
          %559 = vmatprep.subr.bf16.mxu0 0
          %560 = vmatpush1.bf16.msra.mxu0 0
          %561 = vmatprep.mubr.bf16.mxu0 0
          %562 = vmatmul.mubr.bf16.gmra.mrb[0].mxu0 %v521
          %v563 = vpop.f32.mrb[0].mxu0
          %v564 = vadd.f32 0.0, %v563
          %v565 = vpop.f32.mrb[0].mxu0
          %v566 = vpop.f32.mrb[0].mxu0
          %v567 = vadd.f32 0.0, %v566
          %v568 = vpop.f32.mrb[0].mxu0
          %569 = vmatprep.mubr.bf16.mxu0 0
          %570 = vmatmul.mubr.bf16.gmra.mrb[0].mxu0 %v524
          %v571 = vpop.f32.mrb[0].mxu0
          %v572 = vadd.f32 0.0, %v571
          %v573 = vpop.f32.mrb[0].mxu0
          %v574 = vpop.f32.mrb[0].mxu0
          %v575 = vadd.f32 0.0, %v574
          %v576 = vpop.f32.mrb[0].mxu0
          %577 = vdwg.mxu0
          %v578 = vadd.f32 %v484, %v564
          %v579 = vadd.f32 %v487, %v567
          %v580 = vadd.f32 %v492, %v572
          %v581 = vadd.f32 %v495, %v575
          %s582 = scalar_lea.vmem [#allocation3], %s269
          %583 = vst [vmem:[%s582] sm:$0xff] %v578
          %584 = vst [vmem:[%s582 + $0x8] sm:$0xff] %v579
          %585 = vst [vmem:[%s582 + $0x10] sm:$0xff] %v580
          %586 = vst [vmem:[%s582 + $0x18] sm:$0xff] %v581
        $region52: #{tpu_custom_call.1} parent=39 // pred_fallthru
          _
        %p587 = scmp.gt.s32.totalorder %s24, 0
        // Predicated region
        $region53: #{tpu_custom_call.1} parent=39 // pred_check
          %p588 = pneg %p587
        $region54: #{tpu_custom_call.1} parent=39 // pred_check_branch
          %590 = sbr.rel (%p588) target = $region56
        $region55: #{tpu_custom_call.1} parent=39 // pred_region
          %s591 = scalar_lea.vmem [#allocation3], %s269
          %v592 = vld [vmem:[%s591] sm:$0xff]
          %v593 = vld [vmem:[%s591 + $0x8] sm:$0xff]
          %v594 = vld [vmem:[%s591 + $0x10] sm:$0xff]
          %v595 = vld [vmem:[%s591 + $0x18] sm:$0xff]
          %v596 = vadd.f32 %v592, %v484
          %v597 = vadd.f32 %v593, %v487
          %v598 = vadd.f32 %v594, %v492
          %v599 = vadd.f32 %v595, %v495
          %600 = vst [vmem:[%s591] sm:$0xff] %v596
          %601 = vst [vmem:[%s591 + $0x8] sm:$0xff] %v597
          %602 = vst [vmem:[%s591 + $0x10] sm:$0xff] %v598
          %603 = vst [vmem:[%s591 + $0x18] sm:$0xff] %v599
        $region56: #{tpu_custom_call.1} parent=39 // pred_fallthru
          _
        %s604 = scalar_lea.vmem [#allocation3], %s269
        %v605 = vld [vmem:[%s604] sm:$0xff]
        %v606 = vld [vmem:[%s604 + $0x8] sm:$0xff]
        %v607 = vld [vmem:[%s604 + $0x10] sm:$0xff]
        %v608 = vld [vmem:[%s604 + $0x18] sm:$0xff]
        %p609 = scmp.lt.s32.totalorder %s24, 2
        // Predicated region
        $region57: #{tpu_custom_call.1} parent=39 // pred_check
          %p610 = pneg %p609
        $region58: #{tpu_custom_call.1} parent=39 // pred_check_branch
          %612 = sbr.rel (%p610) target = $region60
        $region59: #{tpu_custom_call.1} parent=39 // pred_region
          %613 = vst [vmem:[%s256] sm:$0xff] %v605
          %614 = vst [vmem:[%s256 + $0x8] sm:$0xff] %v606
          %615 = vst [vmem:[%s256 + $0x10] sm:$0xff] %v607
          %616 = vst [vmem:[%s256 + $0x18] sm:$0xff] %v608
        $region60: #{tpu_custom_call.1} parent=39 // pred_fallthru
          _
        %p617 = scmp.eq.s32.totalorder %s24, 2
        // Predicated region
        $region61: #{tpu_custom_call.1} parent=39 // pred_check
          %p618 = pneg %p617
        $region62: #{tpu_custom_call.1} parent=39 // pred_check_branch
          %620 = sbr.rel (%p618) target = $region64
        $region63: #{tpu_custom_call.1} parent=39 // pred_region
          %v621 = vld [vmem:[%s4] sm:$0x1]
          %v623 = vlaneseq
          %v624 = vshrl.u32 %v623, 7
          %v625 = vsub.s32 0, %v624
          %v626 = vrot.slane %v621, %v625
          %v628 = vadd.f32 %v605, %v626
          %v629 = vadd.f32 %v606, %v626
          %v630 = vadd.f32 %v607, %v626
          %v631 = vadd.f32 %v608, %v626
          %v632 = vmax.f32 %v628, 0.0
          %v633 = vmax.f32 %v629, 0.0
          %v634 = vmax.f32 %v630, 0.0
          %v635 = vmax.f32 %v631, 0.0
          %636 = vst [vmem:[%s256] sm:$0xff] %v632
          %637 = vst [vmem:[%s256 + $0x8] sm:$0xff] %v633
          %638 = vst [vmem:[%s256 + $0x10] sm:$0xff] %v634
          %639 = vst [vmem:[%s256 + $0x18] sm:$0xff] %v635
        $region64: #{tpu_custom_call.1} parent=39 // pred_fallthru
          _
        %s640 = sand.u32 %s155, 1
        %s641 = scalar_lea.sflag [#allocation6], %s640
        %s642 = sand.u32 %s155, 1
        %s643 = smul.addr %s642, 32
        %s644 = scalar_lea.vmem [#allocation7], %s643
        // Predicated region
        $region65: #{tpu_custom_call.1} parent=39 // pred_check
          %p645 = pneg %p165
        $region66: #{tpu_custom_call.1} parent=39 // pred_check_branch
          %647 = sbr.rel (%p645) target = $region68
        $region67: #{tpu_custom_call.1} parent=39 // pred_region
          %s648 = smul.u32 4, %s25
          %s650 = ssub.s32 512, 512
          %651 = vsyncadd %s641, %s650
          %s652 = smul.addr %s648, 128
          %s653 = scalar_lea.hbm %s5, %s652
          %s654 = sshll.u32 %s644, 4
          %s655 = int_to_ptr.vmem [resolvable:$true] %s654
          %660 = dma.vmem_to_hbm [thread:$0]  %s655, 512, %s653, %s641, 128, 128, 8
        $region68: #{tpu_custom_call.1} parent=39 // pred_fallthru
          _
      $region40: #{tpu_custom_call.1} parent=5 // pred_fallthru
        _
      %p661 = scmp.le.s32.totalorder 2, %s15
      // Predicated region
      $region69: #{tpu_custom_call.1} parent=5 // pred_check
        %p662 = pneg %p661
      $region70: #{tpu_custom_call.1} parent=5 // pred_check_branch
        %664 = sbr.rel (%p662) target = $region72
      $region71: #{tpu_custom_call.1} parent=5 // pred_region
        %s665 = ssub.s32 %s15, 2
        // Predicated region
        $region73: #{tpu_custom_call.1} parent=71 // pred_check
          %p666 = pneg %p171
        $region74: #{tpu_custom_call.1} parent=71 // pred_check_branch
          %668 = sbr.rel (%p666) target = $region76
        $region75: #{tpu_custom_call.1} parent=71 // pred_region
          %s669 = sand.u32 %s156, 1
          %s670 = scalar_lea.sflag [#allocation6], %s669
          %s671 = sand.u32 %s156, 1
          %s672 = smul.addr %s671, 32
          %s673 = scalar_lea.vmem [#allocation7], %s672
          %674 = dma.done %s670, 512
        $region76: #{tpu_custom_call.1} parent=71 // pred_fallthru
          _
      $region72: #{tpu_custom_call.1} parent=5 // pred_fallthru
        _
    $region6: #{tpu_custom_call.1} parent=1 // loop_footer
      %s19 = sadd.s32 1, %s15
    $region7: #{tpu_custom_call.1} parent=1 // loop_footer_branch
      %14 = sbr.rel target = $region3
    $region8: #{tpu_custom_call.1} parent=1 // loop_exit
      _
    %675 = vsyncpa [#allocation5], 1
    %s676 = scalar_lea.sflag [#allocation5], 1
    %677 = vsyncpa %s676, 1
    %678 = vsyncpa [#allocation6], 1
    %s679 = scalar_lea.sflag [#allocation6], 1
    %680 = vsyncpa %s679, 1

</llo_original>
